<compile_context>
chip_gen: v7x
topology: tpu7x:2x2x1
jax: 0.10.0
libtpu: 0.0.40
codegen_flags: <defaults>
</compile_context>

<pallas_src>
import jax
import jax.numpy as jnp
from jax.experimental import pallas as pl
from jax.experimental.pallas import tpu as pltpu


def _mce_kernel(x_ref, t_ref, num_ref, den_ref):
    """One (tile_rows, C) tile; accumulates per-row partials into outputs.

    num_ref/den_ref are (tile_rows, 1) output blocks that stay resident across
    the inner ("arbitrary") grid axis, acting as accumulators.
    """
    j = pl.program_id(1)

    @pl.when(j == 0)
    def _init():
        num_ref[...] = jnp.zeros_like(num_ref)
        den_ref[...] = jnp.zeros_like(den_ref)

    x = x_ref[...].astype(jnp.float32)
    t = t_ref[...].astype(jnp.float32)

    # Numerically stable pieces of log-softmax over the class (lane) axis.
    m = jnp.max(x, axis=-1, keepdims=True)                                  # (rows, 1)
    lse = jnp.log(jnp.sum(jnp.exp(x - m), axis=-1, keepdims=True))          # (rows, 1)

    row_t = jnp.sum(t, axis=-1, keepdims=True)                              # sum_c t
    row_xt = jnp.sum(x * t, axis=-1, keepdims=True)                         # sum_c x*t

    # sum_c(-log_softmax(x) * t) == (m + lse) * sum_c(t) - sum_c(x * t)
    num_ref[...] += (m + lse) * row_t - row_xt
    den_ref[...] += row_t


def _row_align(dtype):
    # Native sublane tiling: f32 -> 8, bf16 -> 16, int8/fp8 -> 32.
    return max(8, 32 // jnp.dtype(dtype).itemsize)


def multi_cross_entropy(x, target, *, tile_rows=None, num_parallel=2,
                        vmem_budget_bytes=8 * 1024 * 1024):
    """x, target: (N, C).  Returns scalar float32 loss."""
    assert x.shape == target.shape and x.ndim == 2
    N, C = x.shape

    row_align = max(_row_align(x.dtype), _row_align(target.dtype))

    if tile_rows is None:
        # Two inputs, double-buffered by the pipeline.
        bytes_per_row = 2 * C * (jnp.dtype(x.dtype).itemsize
                                 + jnp.dtype(target.dtype).itemsize)
        t_rows = vmem_budget_bytes // max(bytes_per_row, 1)
        t_rows = max(row_align, (t_rows // row_align) * row_align)
        t_rows = min(t_rows, 1024)
        rows_up = -(-N // row_align) * row_align
        tile_rows = min(t_rows, rows_up)
    else:
        assert tile_rows % row_align == 0, (
            f"tile_rows must be a multiple of {row_align} for these dtypes")

    # Leading "parallel" axis (megacore on v7x); inner axis is the reduction.
    n_tiles = -(-N // tile_rows)
    P = num_parallel if n_tiles >= num_parallel else 1
    steps = -(-n_tiles // P)
    N_pad = P * steps * tile_rows

    if N_pad != N:
        pad = N_pad - N
        # Exact: zero-target rows add 0 to numerator and denominator.
        x = jnp.pad(x, ((0, pad), (0, 0)))
        target = jnp.pad(target, ((0, pad), (0, 0)))

    in_map = lambda i, j: (i * steps + j, 0)
    out_map = lambda i, j: (i, 0, 0)

    num_part, den_part = pl.pallas_call(
        _mce_kernel,
        out_shape=(
            jax.ShapeDtypeStruct((P, tile_rows, 1), jnp.float32),
            jax.ShapeDtypeStruct((P, tile_rows, 1), jnp.float32),
        ),
        grid_spec=pltpu.PrefetchScalarGridSpec(
            num_scalar_prefetch=0,
            grid=(P, steps),
            in_specs=[
                pl.BlockSpec((tile_rows, C), in_map),
                pl.BlockSpec((tile_rows, C), in_map),
            ],
            out_specs=[
                pl.BlockSpec((None, tile_rows, 1), out_map),
                pl.BlockSpec((None, tile_rows, 1), out_map),
            ],
        ),
        compiler_params=pltpu.CompilerParams(
            dimension_semantics=("parallel", "arbitrary"),
            vmem_limit_bytes=32 * 1024 * 1024,
        ),
    )(x, target)

    # Tiny final reduction + divide in plain XLA.
    return jnp.sum(num_part) / jnp.sum(den_part)


def _reference(x, target):
    xf = x.astype(jnp.float32)
    tf = target.astype(jnp.float32)
    logit = jax.nn.log_softmax(xf, axis=1)
    return jnp.sum(-logit * tf) / jnp.sum(tf)


if __name__ == "__main__":
    key = jax.random.PRNGKey(0)
    k1, k2, k3, k4 = jax.random.split(key, 4)

    # Test 1: small, deliberately unaligned shape (exercises the padded tail),
    # auto tile selection.
    N, C = 37, 96
    x = jax.random.normal(k1, (N, C), dtype=jnp.float32)
    target = jax.random.uniform(k2, (N, C), dtype=jnp.float32)

    loss = multi_cross_entropy(x, target)
    jax.block_until_ready(loss)
    ref = _reference(x, target)
    assert jnp.allclose(loss, ref, rtol=1e-4, atol=1e-5), (loss, ref)

    # Test 2: forced small tile -> multi-step reduction axis + parallel axis.
    loss2 = multi_cross_entropy(x, target, tile_rows=8)
    jax.block_until_ready(loss2)
    assert jnp.allclose(loss2, ref, rtol=1e-4, atol=1e-5), (loss2, ref)

    # Test 3: bf16 inputs in HBM, cast to f32 inside the kernel.
    xb = jax.random.normal(k3, (40, 128), dtype=jnp.bfloat16)
    tb = jax.random.uniform(k4, (40, 128), dtype=jnp.bfloat16)
    loss3 = multi_cross_entropy(xb, tb)
    jax.block_until_ready(loss3)
    ref3 = _reference(xb, tb)
    assert jnp.allclose(loss3, ref3, rtol=1e-4, atol=1e-4), (loss3, ref3)

    print("KERNEL_OK")
</pallas_src>

<mosaic_0001>
module attributes {stable_mosaic.version = 11 : i64} {
  func.func @_mce_kernel(%arg0: i32, %arg1: i32, %arg2: memref<40x96xf32, #tpu.memory_space<vmem>>, %arg3: memref<40x96xf32, #tpu.memory_space<vmem>>, %arg4: memref<1x40x1xf32, #tpu.memory_space<vmem>>, %arg5: memref<1x40x1xf32, #tpu.memory_space<vmem>>) attributes {dimension_semantics = [#tpu.dimension_semantics<parallel>, #tpu.dimension_semantics<arbitrary>], iteration_bounds = array<i64: 1, 1>, scalar_prefetch = 0 : i64, scratch_operands = 0 : i64, tpu.core_type = #tpu.core_type<tc>, window_params = [{transform_indices = @transform_0, window_bounds = array<i64: 40, 96>}, {transform_indices = @transform_1, window_bounds = array<i64: 40, 96>}, {transform_indices = @transform_2, window_bounds = array<i64: 1, 40, 1>}, {transform_indices = @transform_3, window_bounds = array<i64: 1, 40, 1>}]} {
    %c0_i32 = arith.constant 0 : i32
    %0 = arith.cmpi eq, %arg1, %c0_i32 : i32
    %1 = arith.extui %0 : i1 to i32
    %c0_i32_0 = arith.constant 0 : i32
    %2 = arith.cmpi ne, %1, %c0_i32_0 : i32
    scf.if %2 {
      %cst_19 = arith.constant 0.000000e+00 : f32
      %33 = vector.broadcast %cst_19 : f32 to vector<40x1xf32>
      %c0_20 = arith.constant 0 : index
      %c0_21 = arith.constant 0 : index
      %c0_22 = arith.constant 0 : index
      %34 = vector.load %arg4[%c0_20, %c0_21, %c0_22] : memref<1x40x1xf32, #tpu.memory_space<vmem>>, vector<1x40x1xf32>
      %35 = vector.shape_cast %34 : vector<1x40x1xf32> to vector<40x1xf32>
      %36 = vector.shape_cast %33 : vector<40x1xf32> to vector<1x40x1xf32>
      tpu.vector_store %arg4[%c0_20, %c0_21, %c0_22], %36 {strides = array<i32>} : memref<1x40x1xf32, #tpu.memory_space<vmem>>, vector<1x40x1xf32>,
      %cst_23 = arith.constant 0.000000e+00 : f32
      %37 = vector.broadcast %cst_23 : f32 to vector<40x1xf32>
      %c0_24 = arith.constant 0 : index
      %c0_25 = arith.constant 0 : index
      %c0_26 = arith.constant 0 : index
      %38 = vector.load %arg5[%c0_24, %c0_25, %c0_26] : memref<1x40x1xf32, #tpu.memory_space<vmem>>, vector<1x40x1xf32>
      %39 = vector.shape_cast %38 : vector<1x40x1xf32> to vector<40x1xf32>
      %40 = vector.shape_cast %37 : vector<40x1xf32> to vector<1x40x1xf32>
      tpu.vector_store %arg5[%c0_24, %c0_25, %c0_26], %40 {strides = array<i32>} : memref<1x40x1xf32, #tpu.memory_space<vmem>>, vector<1x40x1xf32>,
    } else {
    }
    %c0 = arith.constant 0 : index
    %c0_1 = arith.constant 0 : index
    %3 = vector.load %arg2[%c0, %c0_1] : memref<40x96xf32, #tpu.memory_space<vmem>>, vector<40x96xf32>
    %c0_2 = arith.constant 0 : index
    %c0_3 = arith.constant 0 : index
    %4 = vector.load %arg3[%c0_2, %c0_3] : memref<40x96xf32, #tpu.memory_space<vmem>>, vector<40x96xf32>
    %cst = arith.constant dense<0xFF800000> : vector<40xf32>
    %5 = vector.multi_reduction <maximumf>, %3, %cst [1] : vector<40x96xf32> to vector<40xf32>
    %6 = vector.shape_cast %5 : vector<40xf32> to vector<40x1xf32>
    %7 = vector.broadcast %6 : vector<40x1xf32> to vector<40x96xf32>
    %8 = arith.subf %3, %7 : vector<40x96xf32>
    %9 = math.exp %8 : vector<40x96xf32>
    %cst_4 = arith.constant dense<0.000000e+00> : vector<40xf32>
    %10 = vector.multi_reduction <add>, %9, %cst_4 [1] : vector<40x96xf32> to vector<40xf32>
    %11 = vector.shape_cast %10 : vector<40xf32> to vector<40x1xf32>
    %12 = math.log %11 : vector<40x1xf32>
    %cst_5 = arith.constant dense<0.000000e+00> : vector<40xf32>
    %13 = vector.multi_reduction <add>, %4, %cst_5 [1] : vector<40x96xf32> to vector<40xf32>
    %14 = vector.shape_cast %13 : vector<40xf32> to vector<40x1xf32>
    %15 = arith.mulf %3, %4 : vector<40x96xf32>
    %cst_6 = arith.constant dense<0.000000e+00> : vector<40xf32>
    %16 = vector.multi_reduction <add>, %15, %cst_6 [1] : vector<40x96xf32> to vector<40xf32>
    %17 = vector.shape_cast %16 : vector<40xf32> to vector<40x1xf32>
    %c0_7 = arith.constant 0 : index
    %c0_8 = arith.constant 0 : index
    %c0_9 = arith.constant 0 : index
    %18 = vector.load %arg4[%c0_7, %c0_8, %c0_9] : memref<1x40x1xf32, #tpu.memory_space<vmem>>, vector<1x40x1xf32>
    %19 = vector.shape_cast %18 : vector<1x40x1xf32> to vector<40x1xf32>
    %20 = arith.addf %6, %12 : vector<40x1xf32>
    %21 = arith.mulf %20, %14 : vector<40x1xf32>
    %22 = arith.subf %21, %17 : vector<40x1xf32>
    %23 = arith.addf %19, %22 : vector<40x1xf32>
    %c0_10 = arith.constant 0 : index
    %c0_11 = arith.constant 0 : index
    %c0_12 = arith.constant 0 : index
    %24 = vector.load %arg4[%c0_10, %c0_11, %c0_12] : memref<1x40x1xf32, #tpu.memory_space<vmem>>, vector<1x40x1xf32>
    %25 = vector.shape_cast %24 : vector<1x40x1xf32> to vector<40x1xf32>
    %26 = vector.shape_cast %23 : vector<40x1xf32> to vector<1x40x1xf32>
    tpu.vector_store %arg4[%c0_10, %c0_11, %c0_12], %26 {strides = array<i32>} : memref<1x40x1xf32, #tpu.memory_space<vmem>>, vector<1x40x1xf32>,
    %c0_13 = arith.constant 0 : index
    %c0_14 = arith.constant 0 : index
    %c0_15 = arith.constant 0 : index
    %27 = vector.load %arg5[%c0_13, %c0_14, %c0_15] : memref<1x40x1xf32, #tpu.memory_space<vmem>>, vector<1x40x1xf32>
    %28 = vector.shape_cast %27 : vector<1x40x1xf32> to vector<40x1xf32>
    %29 = arith.addf %28, %14 : vector<40x1xf32>
    %c0_16 = arith.constant 0 : index
    %c0_17 = arith.constant 0 : index
    %c0_18 = arith.constant 0 : index
    %30 = vector.load %arg5[%c0_16, %c0_17, %c0_18] : memref<1x40x1xf32, #tpu.memory_space<vmem>>, vector<1x40x1xf32>
    %31 = vector.shape_cast %30 : vector<1x40x1xf32> to vector<40x1xf32>
    %32 = vector.shape_cast %29 : vector<40x1xf32> to vector<1x40x1xf32>
    tpu.vector_store %arg5[%c0_16, %c0_17, %c0_18], %32 {strides = array<i32>} : memref<1x40x1xf32, #tpu.memory_space<vmem>>, vector<1x40x1xf32>,
    return
  }
  func.func @transform_0(%arg0: i32, %arg1: i32) -> (i32, i32) {
    %c1_i32 = arith.constant 1 : i32
    %0 = arith.muli %arg0, %c1_i32 : i32
    %1 = arith.addi %0, %arg1 : i32
    %c0_i32 = arith.constant 0 : i32
    %c0_i32_0 = arith.constant 0 : i32
    return %1, %c0_i32 : i32, i32
  }
  func.func @transform_1(%arg0: i32, %arg1: i32) -> (i32, i32) {
    %c1_i32 = arith.constant 1 : i32
    %0 = arith.muli %arg0, %c1_i32 : i32
    %1 = arith.addi %0, %arg1 : i32
    %c0_i32 = arith.constant 0 : i32
    %c0_i32_0 = arith.constant 0 : i32
    return %1, %c0_i32 : i32, i32
  }
  func.func @transform_2(%arg0: i32, %arg1: i32) -> (i32, i32, i32) {
    %c0_i32 = arith.constant 0 : i32
    %c0_i32_0 = arith.constant 0 : i32
    %c0_i32_1 = arith.constant 0 : i32
    return %arg0, %c0_i32, %c0_i32_0 : i32, i32, i32
  }
  func.func @transform_3(%arg0: i32, %arg1: i32) -> (i32, i32, i32) {
    %c0_i32 = arith.constant 0 : i32
    %c0_i32_0 = arith.constant 0 : i32
    %c0_i32_1 = arith.constant 0 : i32
    return %arg0, %c0_i32, %c0_i32_0 : i32, i32, i32
  }
}

</mosaic_0001>

<llo_original>
// kernel: tpu_custom_call.1
$region0: #{tpu_custom_call.1}
  #allocation0 [shape = 'u32[]', space=smem, size = 0x4, offset = 0x4, fixed_abs, tag = 'smem constant byte address 0x4 - core index']
  #allocation1 [shape = 'u32[144,128]{1,0:T(1,128)}', space=vmem, size = 0x12000, scoped, tag = 'internal scratch']
  %s0 = inlined_call_operand.hbm [shape: f32[40,96], index: 0, kind: input, shape index: {}]
  %s1 = inlined_call_operand.hbm [shape: f32[40,96], index: 1, kind: input, shape index: {}]
  %s2 = inlined_call_operand.vmem [shape: f32[1,40,1], index: 2, kind: output, shape index: {0}]
  %s3 = inlined_call_operand.vmem [shape: f32[1,40,1], index: 3, kind: output, shape index: {1}]
  %4 = xla_tuple %s2, %s3
  %s5 = sld [smem:[#allocation0]]
  $region38: #{tpu_custom_call.1} parent=0
    _
  %s7 = ssub.s32 1, %s5
  %s8 = scalar_select 0, %s7, %s5
  $region1: #{tpu_custom_call.1} parent=0
    #allocation2 [shape = 'u8[20480]{0}', space=vmem, size = 0x5000, scoped, tag = 'input window, operand 0, single buffered']
    #allocation3 [shape = 's32[1]{0}', space=sflag, size = 0x4, scoped, tag = 'scoped memory for tpu_custom_call.1']
    #allocation4 [shape = 'u8[20480]{0}', space=vmem, size = 0x5000, scoped, tag = 'input window, operand 1, single buffered']
    #allocation5 [shape = 's32[1]{0}', space=sflag, size = 0x4, scoped, tag = 'scoped memory for tpu_custom_call.1']
    %9 = vsyncpa [#allocation3], 0
    %10 = vsyncpa [#allocation5], 0
    // Predicated region
    $region2: #{tpu_custom_call.1} parent=1 // pred_check
      _
    $region3: #{tpu_custom_call.1} parent=1 // pred_check_branch
      %12 = sbr.rel (0) target = $region5
    $region4: #{tpu_custom_call.1} parent=1 // pred_region
      %s13 = sadd.s32 0, 0
      %s14 = smul.u32 5, %s13
      %s16 = ssub.s32 640, 640
      %17 = vsyncadd [#allocation3], %s16
      %s18 = smul.addr %s14, 128
      %s19 = scalar_lea.hbm %s0, %s18
      %s20 = sshll.u32 [#allocation2], 4
      %s21 = int_to_ptr.vmem [resolvable:$true] %s20
      %26 = dma.hbm_to_vmem [thread:$0]  %s19, 640, %s21, [#allocation3], 128, 128, 8
    $region5: #{tpu_custom_call.1} parent=1 // pred_fallthru
      _
    // Predicated region
    $region6: #{tpu_custom_call.1} parent=1 // pred_check
      _
    $region7: #{tpu_custom_call.1} parent=1 // pred_check_branch
      %28 = sbr.rel (0) target = $region9
    $region8: #{tpu_custom_call.1} parent=1 // pred_region
      %s29 = sadd.s32 0, 0
      %s30 = smul.u32 5, %s29
      %s32 = ssub.s32 640, 640
      %33 = vsyncadd [#allocation5], %s32
      %s34 = smul.addr %s30, 128
      %s35 = scalar_lea.hbm %s1, %s34
      %s36 = sshll.u32 [#allocation4], 4
      %s37 = int_to_ptr.vmem [resolvable:$true] %s36
      %42 = dma.hbm_to_vmem [thread:$0]  %s35, 640, %s37, [#allocation5], 128, 128, 8
    $region9: #{tpu_custom_call.1} parent=1 // pred_fallthru
      _
    // Predicated region
    $region10: #{tpu_custom_call.1} parent=1 // pred_check
      _
    $region11: #{tpu_custom_call.1} parent=1 // pred_check_branch
      %44 = sbr.rel (0) target = $region13
    $region12: #{tpu_custom_call.1} parent=1 // pred_region
      %45 = dma.done [#allocation3], 640
    $region13: #{tpu_custom_call.1} parent=1 // pred_fallthru
      _
    // Predicated region
    $region14: #{tpu_custom_call.1} parent=1 // pred_check
      _
    $region15: #{tpu_custom_call.1} parent=1 // pred_check_branch
      %47 = sbr.rel (0) target = $region17
    $region16: #{tpu_custom_call.1} parent=1 // pred_region
      %48 = dma.done [#allocation5], 640
    $region17: #{tpu_custom_call.1} parent=1 // pred_fallthru
      _
    %s49 = sadd.s32 0, 0
    %s50 = smul.u32 5, %s49
    %s51 = sadd.s32 0, 0
    %s52 = smul.u32 5, %s51
    %p53 = scmp.eq.s32.totalorder 0, 0
    // Predicated region
    $region18: #{tpu_custom_call.1} parent=1 // pred_check
      %p54 = pneg %p53
    $region19: #{tpu_custom_call.1} parent=1 // pred_check_branch
      %56 = sbr.rel (%p54) target = $region21
    $region20: #{tpu_custom_call.1} parent=1 // pred_region
      %vm57 = vcmask 7168
      %58 = vst.msk [vmem:[%s2] sm:$0xff] %vm57, 0.0
      %59 = vst.msk [vmem:[%s2 + $0x8] sm:$0xff] %vm57, 0.0
      %60 = vst.msk [vmem:[%s2 + $0x10] sm:$0xff] %vm57, 0.0
      %61 = vst.msk [vmem:[%s2 + $0x18] sm:$0xff] %vm57, 0.0
      %62 = vst.msk [vmem:[%s2 + $0x20] sm:$0xff] %vm57, 0.0
      %63 = vst.msk [vmem:[%s3] sm:$0xff] %vm57, 0.0
      %64 = vst.msk [vmem:[%s3 + $0x8] sm:$0xff] %vm57, 0.0
      %65 = vst.msk [vmem:[%s3 + $0x10] sm:$0xff] %vm57, 0.0
      %66 = vst.msk [vmem:[%s3 + $0x18] sm:$0xff] %vm57, 0.0
      %67 = vst.msk [vmem:[%s3 + $0x20] sm:$0xff] %vm57, 0.0
    $region21: #{tpu_custom_call.1} parent=1 // pred_fallthru
      _
    %v68 = vld [vmem:[#allocation2] sm:$0xff]
    %v69 = vld [vmem:[#allocation2 + $0x8] sm:$0xff]
    %v70 = vld [vmem:[#allocation2 + $0x10] sm:$0xff]
    %v71 = vld [vmem:[#allocation2 + $0x18] sm:$0xff]
    %v72 = vld [vmem:[#allocation2 + $0x20] sm:$0xff]
    %v73 = vld [vmem:[#allocation4] sm:$0xff]
    %v74 = vld [vmem:[#allocation4 + $0x8] sm:$0xff]
    %v75 = vld [vmem:[#allocation4 + $0x10] sm:$0xff]
    %v76 = vld [vmem:[#allocation4 + $0x18] sm:$0xff]
    %v77 = vld [vmem:[#allocation4 + $0x20] sm:$0xff]
    %vm78 = vcmask 785408
    %v79 = vsel %vm78, %v68, -inf
    %80 = vmax.xlane.f32.xlu0 %v79
    %v81 = vpop.xlane.xlu0 %80
    %v82 = vsel %vm78, %v69, -inf
    %83 = vmax.xlane.f32.xlu0 %v82
    %v84 = vpop.xlane.xlu0 %83
    %v85 = vsel %vm78, %v70, -inf
    %86 = vmax.xlane.f32.xlu0 %v85
    %v87 = vpop.xlane.xlu0 %86
    %v88 = vsel %vm78, %v71, -inf
    %89 = vmax.xlane.f32.xlu0 %v88
    %v90 = vpop.xlane.xlu0 %89
    %v91 = vsel %vm78, %v72, -inf
    %92 = vmax.xlane.f32.xlu0 %v91
    %v93 = vpop.xlane.xlu0 %92
    %v94 = vsub.f32 %v68, %v81
    %v95 = vsub.f32 %v69, %v84
    %v96 = vsub.f32 %v70, %v87
    %v97 = vsub.f32 %v71, %v90
    %v98 = vsub.f32 %v72, %v93
    %v99 = vmul.f32 %v94, 1.442695
    %v100 = vpow.pop %v99
    %v101 = vmul.f32 %v95, 1.442695
    %v102 = vpow.pop %v101
    %v103 = vmul.f32 %v96, 1.442695
    %v104 = vpow.pop %v103
    %v105 = vmul.f32 %v97, 1.442695
    %v106 = vpow.pop %v105
    %v107 = vmul.f32 %v98, 1.442695
    %v108 = vpow.pop %v107
    %v109 = vsel %vm78, %v100, 0.0
    %110 = vadd.xlane.f32.xlu0 %v109
    %v111 = vpop.xlane.xlu0 %110
    %v112 = vsel %vm78, %v102, 0.0
    %113 = vadd.xlane.f32.xlu0 %v112
    %v114 = vpop.xlane.xlu0 %113
    %v115 = vsel %vm78, %v104, 0.0
    %116 = vadd.xlane.f32.xlu0 %v115
    %v117 = vpop.xlane.xlu0 %116
    %v118 = vsel %vm78, %v106, 0.0
    %119 = vadd.xlane.f32.xlu0 %v118
    %v120 = vpop.xlane.xlu0 %119
    %v121 = vsel %vm78, %v108, 0.0
    %122 = vadd.xlane.f32.xlu0 %v121
    %v123 = vpop.xlane.xlu0 %122
    %v124 = vlog2.pop %v111
    %v125 = vmul.f32 %v124, 0.6931472
    %v126 = vlog2.pop %v114
    %v127 = vmul.f32 %v126, 0.6931472
    %v128 = vlog2.pop %v117
    %v129 = vmul.f32 %v128, 0.6931472
    %v130 = vlog2.pop %v120
    %v131 = vmul.f32 %v130, 0.6931472
    %v132 = vlog2.pop %v123
    %v133 = vmul.f32 %v132, 0.6931472
    %v134 = vsel %vm78, %v73, 0.0
    %135 = vadd.xlane.f32.xlu0 %v134
    %v136 = vpop.xlane.xlu0 %135
    %v137 = vsel %vm78, %v74, 0.0
    %138 = vadd.xlane.f32.xlu0 %v137
    %v139 = vpop.xlane.xlu0 %138
    %v140 = vsel %vm78, %v75, 0.0
    %141 = vadd.xlane.f32.xlu0 %v140
    %v142 = vpop.xlane.xlu0 %141
    %v143 = vsel %vm78, %v76, 0.0
    %144 = vadd.xlane.f32.xlu0 %v143
    %v145 = vpop.xlane.xlu0 %144
    %v146 = vsel %vm78, %v77, 0.0
    %147 = vadd.xlane.f32.xlu0 %v146
    %v148 = vpop.xlane.xlu0 %147
    %v149 = vmul.f32 %v68, %v73
    %v150 = vmul.f32 %v69, %v74
    %v151 = vmul.f32 %v70, %v75
    %v152 = vmul.f32 %v71, %v76
    %v153 = vmul.f32 %v72, %v77
    %v154 = vsel %vm78, %v149, 0.0
    %155 = vadd.xlane.f32.xlu0 %v154
    %v156 = vpop.xlane.xlu0 %155
    %v157 = vsel %vm78, %v150, 0.0
    %158 = vadd.xlane.f32.xlu0 %v157
    %v159 = vpop.xlane.xlu0 %158
    %v160 = vsel %vm78, %v151, 0.0
    %161 = vadd.xlane.f32.xlu0 %v160
    %v162 = vpop.xlane.xlu0 %161
    %v163 = vsel %vm78, %v152, 0.0
    %164 = vadd.xlane.f32.xlu0 %v163
    %v165 = vpop.xlane.xlu0 %164
    %v166 = vsel %vm78, %v153, 0.0
    %167 = vadd.xlane.f32.xlu0 %v166
    %v168 = vpop.xlane.xlu0 %167
    %v169 = vld [vmem:[%s2] sm:$0xff]
    %v170 = vld [vmem:[%s2 + $0x8] sm:$0xff]
    %v171 = vld [vmem:[%s2 + $0x10] sm:$0xff]
    %v172 = vld [vmem:[%s2 + $0x18] sm:$0xff]
    %v173 = vld [vmem:[%s2 + $0x20] sm:$0xff]
    %v174 = vadd.f32 %v81, %v125
    %v175 = vadd.f32 %v84, %v127
    %v176 = vadd.f32 %v87, %v129
    %v177 = vadd.f32 %v90, %v131
    %v178 = vadd.f32 %v93, %v133
    %v179 = vmul.f32 %v174, %v136
    %v180 = vmul.f32 %v175, %v139
    %v181 = vmul.f32 %v176, %v142
    %v182 = vmul.f32 %v177, %v145
    %v183 = vmul.f32 %v178, %v148
    %v184 = vsub.f32 %v179, %v156
    %v185 = vsub.f32 %v180, %v159
    %v186 = vsub.f32 %v181, %v162
    %v187 = vsub.f32 %v182, %v165
    %v188 = vsub.f32 %v183, %v168
    %v189 = vadd.f32 %v169, %v184
    %v190 = vadd.f32 %v170, %v185
    %v191 = vadd.f32 %v171, %v186
    %v192 = vadd.f32 %v172, %v187
    %v193 = vadd.f32 %v173, %v188
    %vm194 = vcmask 7168
    %195 = vst.msk [vmem:[%s2] sm:$0xff] %vm194, %v189
    %196 = vst.msk [vmem:[%s2 + $0x8] sm:$0xff] %vm194, %v190
    %197 = vst.msk [vmem:[%s2 + $0x10] sm:$0xff] %vm194, %v191
    %198 = vst.msk [vmem:[%s2 + $0x18] sm:$0xff] %vm194, %v192
    %199 = vst.msk [vmem:[%s2 + $0x20] sm:$0xff] %vm194, %v193
    %v200 = vld [vmem:[%s3] sm:$0xff]
    %v201 = vld [vmem:[%s3 + $0x8] sm:$0xff]
    %v202 = vld [vmem:[%s3 + $0x10] sm:$0xff]
    %v203 = vld [vmem:[%s3 + $0x18] sm:$0xff]
    %v204 = vld [vmem:[%s3 + $0x20] sm:$0xff]
    %v205 = vadd.f32 %v200, %v136
    %v206 = vadd.f32 %v201, %v139
    %v207 = vadd.f32 %v202, %v142
    %v208 = vadd.f32 %v203, %v145
    %v209 = vadd.f32 %v204, %v148
    %210 = vst.msk [vmem:[%s3] sm:$0xff] %vm194, %v205
    %211 = vst.msk [vmem:[%s3 + $0x8] sm:$0xff] %vm194, %v206
    %212 = vst.msk [vmem:[%s3 + $0x10] sm:$0xff] %vm194, %v207
    %213 = vst.msk [vmem:[%s3 + $0x18] sm:$0xff] %vm194, %v208
    %214 = vst.msk [vmem:[%s3 + $0x20] sm:$0xff] %vm194, %v209
    // Predicated region
    $region22: #{tpu_custom_call.1} parent=1 // pred_check
      _
    $region23: #{tpu_custom_call.1} parent=1 // pred_check_branch
      %216 = sbr.rel (0) target = $region25
    $region24: #{tpu_custom_call.1} parent=1 // pred_region
      _
    $region25: #{tpu_custom_call.1} parent=1 // pred_fallthru
      _
    // Predicated region
    $region26: #{tpu_custom_call.1} parent=1 // pred_check
      _
    $region27: #{tpu_custom_call.1} parent=1 // pred_check_branch
      %218 = sbr.rel (0) target = $region29
    $region28: #{tpu_custom_call.1} parent=1 // pred_region
      _
    $region29: #{tpu_custom_call.1} parent=1 // pred_fallthru
      _
    // Predicated region
    $region30: #{tpu_custom_call.1} parent=1 // pred_check
      _
    $region31: #{tpu_custom_call.1} parent=1 // pred_check_branch
      %220 = sbr.rel (0) target = $region33
    $region32: #{tpu_custom_call.1} parent=1 // pred_region
      _
    $region33: #{tpu_custom_call.1} parent=1 // pred_fallthru
      _
    // Predicated region
    $region34: #{tpu_custom_call.1} parent=1 // pred_check
      _
    $region35: #{tpu_custom_call.1} parent=1 // pred_check_branch
      %222 = sbr.rel (0) target = $region37
    $region36: #{tpu_custom_call.1} parent=1 // pred_region
      _
    $region37: #{tpu_custom_call.1} parent=1 // pred_fallthru
      _
    %223 = vsyncpa [#allocation3], 1
    %224 = vsyncpa [#allocation5], 1

</llo_original>
